<compile_context>
chip_gen: v7x
topology: tpu7x:2x2x1
jax: 0.10.0
libtpu: 0.0.40
codegen_flags: <defaults>
</compile_context>

<pallas_src>
import functools

import jax
import jax.numpy as jnp
from jax.experimental import pallas as pl
from jax.experimental.pallas import tpu as pltpu

_LANE = 128
_SUBLANE = 8


def _round_up(x, m):
    return ((x + m - 1) // m) * m


def _cdiv(a, b):
    return (a + b - 1) // b


def _vmem_capacity_bytes():
    try:
        return int(pltpu.get_tpu_info().vmem_capacity_bytes)
    except Exception:
        return 64 << 20  # conservative fallback (v7x per-TensorCore VMEM)


def _cnet_kernel(x_ref, w1_ref, b1_ref, w2_ref, b2_ref, o_ref, *, d_out, d_out_p):
    # ---- Linear(d_in, h1) + ReLU : bf16 MXU operands, f32 accumulation ----
    x = x_ref[...].astype(jnp.bfloat16)
    h = jnp.dot(x, w1_ref[...], preferred_element_type=jnp.float32)
    h = jnp.maximum(h + b1_ref[...], 0.0)

    # ---- Linear(h1, d_out_p) ----
    logits = jnp.dot(h.astype(jnp.bfloat16), w2_ref[...],
                     preferred_element_type=jnp.float32)
    logits = logits + b2_ref[...]

    # ---- LogSoftmax over dim=1 (all f32) ----
    if d_out_p != d_out:
        # Lane padding exists: keep padded lanes out of the reductions.
        lane = jax.lax.broadcasted_iota(jnp.int32, logits.shape, 1)
        valid = lane < d_out
        logits = jnp.where(valid, logits, jnp.float32(-1e30))
        m = jnp.max(logits, axis=1, keepdims=True)
        e = jnp.where(valid, jnp.exp(logits - m), 0.0)
    else:
        m = jnp.max(logits, axis=1, keepdims=True)
        e = jnp.exp(logits - m)
    lse = jnp.log(jnp.sum(e, axis=1, keepdims=True))
    o_ref[...] = (logits - m - lse).astype(o_ref.dtype)


def cnet_forward(x, w1, b1, w2, b2, *, block_b=1024):
    """x: [B, d_in]; w1: [d_in, h1]; b1: [1, h1] (or [h1]); w2: [h1, d_out]; b2: [1, d_out] (or [d_out])."""
    B, d_in = x.shape
    h1 = w1.shape[1]
    d_out = w2.shape[1]

    # Output lane width: small d_out stays unpadded (8x less HBM writeback at
    # d_out=16, no wrapper lane slice); large non-aligned d_out is rounded up
    # so the stores are lane dense.
    if d_out % _LANE == 0 or d_out < _LANE:
        d_out_p = d_out
    else:
        d_out_p = _round_up(d_out, _LANE)

    # Weights in bf16 (resident in VMEM across the whole grid), biases f32.
    w1_c = w1.astype(jnp.bfloat16)
    w2_c = w2.astype(jnp.bfloat16)
    b1_c = jnp.asarray(b1, jnp.float32).reshape(1, h1)
    b2_c = jnp.asarray(b2, jnp.float32).reshape(1, d_out)
    if d_out_p != d_out:
        w2_c = jnp.pad(w2_c, ((0, 0), (0, d_out_p - d_out)))
        b2_c = jnp.pad(b2_c, ((0, 0), (0, d_out_p - d_out)))

    # ---- batch tile: multiple of 8, load-balanced, capped by a VMEM budget ----
    block_b = max(_SUBLANE, (int(block_b) // _SUBLANE) * _SUBLANE)
    x_item = jnp.dtype(x.dtype).itemsize
    # Worst-case (double-buffered) resident weights + biases.
    weight_bytes = 2 * ((d_in * h1 + h1 * d_out_p) * 2 + (h1 + d_out_p) * 4)
    # Per batch-row VMEM: double-buffered x/out tiles + f32/bf16 intermediates.
    per_row = (2 * d_in * x_item + 2 * d_out_p * 4
               + h1 * 4 + h1 * 2 + d_in * 2 + d_out_p * 8)
    vmem_cap = _vmem_capacity_bytes()
    tile_budget = max(int(vmem_cap * 0.6) - weight_bytes, 1 << 20)
    blk_cap = max(_SUBLANE, (tile_budget // per_row) // _SUBLANE * _SUBLANE)
    blk_max = min(block_b, blk_cap)

    B8 = _round_up(B, _SUBLANE)
    if B8 <= blk_max:
        blk_b = B8
    else:
        n_blocks = _cdiv(B8, blk_max)
        blk_b = _round_up(_cdiv(B, n_blocks), _SUBLANE)
    grid = (_cdiv(B, blk_b),)

    vmem_limit = int(min(int(vmem_cap * 0.75),
                         max(32 << 20, 2 * (weight_bytes + blk_b * per_row))))

    kernel = functools.partial(_cnet_kernel, d_out=d_out, d_out_p=d_out_p)

    cost = pl.CostEstimate(
        flops=2 * B * (d_in * h1 + h1 * d_out_p),
        transcendentals=B * d_out_p,
        bytes_accessed=(B * d_in * x_item
                        + (d_in * h1 + h1 * d_out_p) * 2
                        + (h1 + d_out_p) * 4
                        + B * d_out_p * 4),
    )

    def build_call(resident_kw):
        in_specs = [
            pl.BlockSpec((blk_b, d_in), lambda i: (i, 0)),                  # x: batch-tiled
            pl.BlockSpec((d_in, h1), lambda i: (0, 0), **resident_kw),      # w1: VMEM-resident
            pl.BlockSpec((1, h1), lambda i: (0, 0), **resident_kw),         # b1
            pl.BlockSpec((h1, d_out_p), lambda i: (0, 0), **resident_kw),   # w2
            pl.BlockSpec((1, d_out_p), lambda i: (0, 0), **resident_kw),    # b2
        ]
        return pl.pallas_call(
            kernel,
            out_shape=jax.ShapeDtypeStruct((B, d_out_p), jnp.float32),
            grid=grid,
            in_specs=in_specs,
            out_specs=pl.BlockSpec((blk_b, d_out_p), lambda i: (i, 0)),
            compiler_params=pltpu.CompilerParams(
                dimension_semantics=("parallel",),
                vmem_limit_bytes=vmem_limit),
            cost_estimate=cost,
        )

    try:
        # Constant-index operands gain nothing from double-buffering; halve
        # their VMEM footprint so it can feed a bigger batch tile instead.
        out = build_call(dict(pipeline_mode=pl.Buffered(1)))(x, w1_c, b1_c, w2_c, b2_c)
    except Exception:
        out = build_call({})(x, w1_c, b1_c, w2_c, b2_c)

    if d_out_p != d_out:
        # TODO(synk): fuse the consumer (e.g. NLL gather) to avoid this lane slice.
        out = out[:, :d_out]
    return out


def init_params(key, d_in, h1, d_out):
    """Xavier-uniform weights (init_weights in the spec); nn.Linear default bias init."""
    k1, k2, k3, k4 = jax.random.split(key, 4)
    lim1 = jnp.sqrt(6.0 / (d_in + h1))
    lim2 = jnp.sqrt(6.0 / (h1 + d_out))
    w1 = jax.random.uniform(k1, (d_in, h1), jnp.float32, -lim1, lim1)
    w2 = jax.random.uniform(k3, (h1, d_out), jnp.float32, -lim2, lim2)
    bl1 = 1.0 / jnp.sqrt(d_in)
    bl2 = 1.0 / jnp.sqrt(h1)
    b1 = jax.random.uniform(k2, (1, h1), jnp.float32, -bl1, bl1)
    b2 = jax.random.uniform(k4, (1, d_out), jnp.float32, -bl2, bl2)
    return w1, b1, w2, b2


if __name__ == "__main__":
    d_in, h1, d_out = 32, 64, 16

    key = jax.random.PRNGKey(0)
    kx1, kx2, kp = jax.random.split(key, 3)
    w1, b1, w2, b2 = init_params(kp, d_in, h1, d_out)

    def ref_bf16(x):
        # Mirrors kernel numerics: bf16 MXU operands, f32 accumulation/epilogue.
        h = jnp.dot(x.astype(jnp.bfloat16), w1.astype(jnp.bfloat16),
                    preferred_element_type=jnp.float32) + b1
        h = jnp.maximum(h, 0.0)
        logits = jnp.dot(h.astype(jnp.bfloat16), w2.astype(jnp.bfloat16),
                         preferred_element_type=jnp.float32) + b2
        return jax.nn.log_softmax(logits, axis=1)

    def ref_f32(x):
        h = jnp.maximum(x @ w1 + b1, 0.0)
        return jax.nn.log_softmax(h @ w2 + b2, axis=1)

    # Case 1: single exact block.  Case 2: several blocks with a ragged tail
    # (exercises the no-wrapper-padding boundary handling).
    cases = [
        (jax.random.normal(kx1, (8, d_in), jnp.float32), dict(block_b=1024)),
        (jax.random.normal(kx2, (37, d_in), jnp.float32), dict(block_b=16)),
    ]
    for x, kw in cases:
        out = jax.block_until_ready(cnet_forward(x, w1, b1, w2, b2, **kw))
        assert out.shape == (x.shape[0], d_out)
        assert jnp.allclose(out, ref_bf16(x), atol=1e-3, rtol=1e-3), \
            "mismatch vs bf16-accurate reference"
        assert jnp.allclose(out, ref_f32(x), atol=5e-2, rtol=5e-2), \
            "mismatch vs f32 reference"
        assert jnp.allclose(jnp.sum(jnp.exp(out), axis=1), 1.0, atol=1e-4), \
            "exp(log_softmax) rows must sum to 1"

    print("KERNEL_OK")
</pallas_src>

<mosaic_0001>
module attributes {stable_mosaic.version = 11 : i64} {
  func.func @_cnet_kernel(%arg0: i32, %arg1: memref<8x32xf32, #tpu.memory_space<vmem>>, %arg2: memref<32x64xbf16, #tpu.memory_space<vmem>>, %arg3: memref<1x64xf32, #tpu.memory_space<vmem>>, %arg4: memref<64x16xbf16, #tpu.memory_space<vmem>>, %arg5: memref<1x16xf32, #tpu.memory_space<vmem>>, %arg6: memref<8x16xf32, #tpu.memory_space<vmem>>) attributes {dimension_semantics = [#tpu.dimension_semantics<parallel>], iteration_bounds = array<i64: 1>, scalar_prefetch = 0 : i64, scratch_operands = 0 : i64, tpu.core_type = #tpu.core_type<tc>, window_params = [{transform_indices = @transform_0, window_bounds = array<i64: 8, 32>}, {pipeline_mode = #tpu.pipeline_mode<synchronous>, transform_indices = @transform_1, window_bounds = array<i64: 32, 64>}, {pipeline_mode = #tpu.pipeline_mode<synchronous>, transform_indices = @transform_2, window_bounds = array<i64: 1, 64>}, {pipeline_mode = #tpu.pipeline_mode<synchronous>, transform_indices = @transform_3, window_bounds = array<i64: 64, 16>}, {pipeline_mode = #tpu.pipeline_mode<synchronous>, transform_indices = @transform_4, window_bounds = array<i64: 1, 16>}, {transform_indices = @transform_5, window_bounds = array<i64: 8, 16>}]} {
    %c0 = arith.constant 0 : index
    %c0_0 = arith.constant 0 : index
    %0 = vector.load %arg1[%c0, %c0_0] : memref<8x32xf32, #tpu.memory_space<vmem>>, vector<8x32xf32>
    %1 = arith.truncf %0 : vector<8x32xf32> to vector<8x32xbf16>
    %c0_1 = arith.constant 0 : index
    %c0_2 = arith.constant 0 : index
    %2 = vector.load %arg2[%c0_1, %c0_2] : memref<32x64xbf16, #tpu.memory_space<vmem>>, vector<32x64xbf16>
    %cst = arith.constant dense<0.000000e+00> : vector<8x64xf32>
    %3 = tpu.matmul %1, %2, %cst {dimension_numbers = #tpu.dot_dimension_numbers<[1], [0], [0], [1], [0, 0, 1, 1], [], []>} : vector<8x32xbf16>, vector<32x64xbf16>, vector<8x64xf32> -> vector<8x64xf32>
    %c0_3 = arith.constant 0 : index
    %c0_4 = arith.constant 0 : index
    %4 = vector.load %arg3[%c0_3, %c0_4] : memref<1x64xf32, #tpu.memory_space<vmem>>, vector<1x64xf32>
    %5 = vector.broadcast %4 : vector<1x64xf32> to vector<8x64xf32>
    %6 = arith.addf %3, %5 : vector<8x64xf32>
    %cst_5 = arith.constant 0.000000e+00 : f32
    %7 = vector.broadcast %cst_5 : f32 to vector<8x64xf32>
    %8 = arith.maximumf %6, %7 : vector<8x64xf32>
    %9 = arith.truncf %8 : vector<8x64xf32> to vector<8x64xbf16>
    %c0_6 = arith.constant 0 : index
    %c0_7 = arith.constant 0 : index
    %10 = vector.load %arg4[%c0_6, %c0_7] : memref<64x16xbf16, #tpu.memory_space<vmem>>, vector<64x16xbf16>
    %cst_8 = arith.constant dense<0.000000e+00> : vector<8x16xf32>
    %11 = tpu.matmul %9, %10, %cst_8 {dimension_numbers = #tpu.dot_dimension_numbers<[1], [0], [0], [1], [0, 0, 1, 1], [], []>} : vector<8x64xbf16>, vector<64x16xbf16>, vector<8x16xf32> -> vector<8x16xf32>
    %c0_9 = arith.constant 0 : index
    %c0_10 = arith.constant 0 : index
    %12 = vector.load %arg5[%c0_9, %c0_10] : memref<1x16xf32, #tpu.memory_space<vmem>>, vector<1x16xf32>
    %13 = vector.broadcast %12 : vector<1x16xf32> to vector<8x16xf32>
    %14 = arith.addf %11, %13 : vector<8x16xf32>
    %cst_11 = arith.constant dense<0xFF800000> : vector<8xf32>
    %15 = vector.multi_reduction <maximumf>, %14, %cst_11 [1] : vector<8x16xf32> to vector<8xf32>
    %16 = vector.shape_cast %15 : vector<8xf32> to vector<8x1xf32>
    %17 = vector.broadcast %16 : vector<8x1xf32> to vector<8x16xf32>
    %18 = arith.subf %14, %17 : vector<8x16xf32>
    %19 = math.exp %18 : vector<8x16xf32>
    %cst_12 = arith.constant dense<0.000000e+00> : vector<8xf32>
    %20 = vector.multi_reduction <add>, %19, %cst_12 [1] : vector<8x16xf32> to vector<8xf32>
    %21 = vector.shape_cast %20 : vector<8xf32> to vector<8x1xf32>
    %22 = math.log %21 : vector<8x1xf32>
    %23 = vector.broadcast %16 : vector<8x1xf32> to vector<8x16xf32>
    %24 = arith.subf %14, %23 : vector<8x16xf32>
    %25 = vector.broadcast %22 : vector<8x1xf32> to vector<8x16xf32>
    %26 = arith.subf %24, %25 : vector<8x16xf32>
    %c0_13 = arith.constant 0 : index
    %c0_14 = arith.constant 0 : index
    %27 = vector.load %arg6[%c0_13, %c0_14] : memref<8x16xf32, #tpu.memory_space<vmem>>, vector<8x16xf32>
    tpu.vector_store %arg6[%c0_13, %c0_14], %26 {strides = array<i32>} : memref<8x16xf32, #tpu.memory_space<vmem>>, vector<8x16xf32>,
    return
  }
  func.func @transform_0(%arg0: i32) -> (i32, i32) {
    %c0_i32 = arith.constant 0 : i32
    %c0_i32_0 = arith.constant 0 : i32
    return %arg0, %c0_i32 : i32, i32
  }
  func.func @transform_1(%arg0: i32) -> (i32, i32) {
    %c0_i32 = arith.constant 0 : i32
    %c0_i32_0 = arith.constant 0 : i32
    %c0_i32_1 = arith.constant 0 : i32
    return %c0_i32, %c0_i32_0 : i32, i32
  }
  func.func @transform_2(%arg0: i32) -> (i32, i32) {
    %c0_i32 = arith.constant 0 : i32
    %c0_i32_0 = arith.constant 0 : i32
    %c0_i32_1 = arith.constant 0 : i32
    return %c0_i32, %c0_i32_0 : i32, i32
  }
  func.func @transform_3(%arg0: i32) -> (i32, i32) {
    %c0_i32 = arith.constant 0 : i32
    %c0_i32_0 = arith.constant 0 : i32
    %c0_i32_1 = arith.constant 0 : i32
    return %c0_i32, %c0_i32_0 : i32, i32
  }
  func.func @transform_4(%arg0: i32) -> (i32, i32) {
    %c0_i32 = arith.constant 0 : i32
    %c0_i32_0 = arith.constant 0 : i32
    %c0_i32_1 = arith.constant 0 : i32
    return %c0_i32, %c0_i32_0 : i32, i32
  }
  func.func @transform_5(%arg0: i32) -> (i32, i32) {
    %c0_i32 = arith.constant 0 : i32
    %c0_i32_0 = arith.constant 0 : i32
    return %arg0, %c0_i32 : i32, i32
  }
}

module attributes {stable_mosaic.version = 11 : i64} {
  func.func @_cnet_kernel(%arg0: i32, %arg1: memref<8x32xf32, #tpu.memory_space<vmem>>, %arg2: memref<32x64xbf16, #tpu.memory_space<vmem>>, %arg3: memref<1x64xf32, #tpu.memory_space<vmem>>, %arg4: memref<64x16xbf16, #tpu.memory_space<vmem>>, %arg5: memref<1x16xf32, #tpu.memory_space<vmem>>, %arg6: memref<8x16xf32, #tpu.memory_space<vmem>>) attributes {dimension_semantics = [#tpu.dimension_semantics<parallel>], iteration_bounds = array<i64: 1>, scalar_prefetch = 0 : i64, scratch_operands = 0 : i64, tpu.core_type = #tpu.core_type<tc>, window_params = [{transform_indices = @transform_0, window_bounds = array<i64: 8, 32>}, {pipeline_mode = #tpu.pipeline_mode<synchronous>, transform_indices = @transform_1, window_bounds = array<i64: 32, 64>}, {pipeline_mode = #tpu.pipeline_mode<synchronous>, transform_indices = @transform_2, window_bounds = array<i64: 1, 64>}, {pipeline_mode = #tpu.pipeline_mode<synchronous>, transform_indices = @transform_3, window_bounds = array<i64: 64, 16>}, {pipeline_mode = #tpu.pipeline_mode<synchronous>, transform_indices = @transform_4, window_bounds = array<i64: 1, 16>}, {transform_indices = @transform_5, window_bounds = array<i64: 8, 16>}]} {
    %c0 = arith.constant 0 : index
    %c0_0 = arith.constant 0 : index
    %0 = vector.load %arg1[%c0, %c0_0] : memref<8x32xf32, #tpu.memory_space<vmem>>, vector<8x32xf32>
    %1 = arith.truncf %0 : vector<8x32xf32> to vector<8x32xbf16>
    %c0_1 = arith.constant 0 : index
    %c0_2 = arith.constant 0 : index
    %2 = vector.load %arg2[%c0_1, %c0_2] : memref<32x64xbf16, #tpu.memory_space<vmem>>, vector<32x64xbf16>
    %cst = arith.constant dense<0.000000e+00> : vector<8x64xf32>
    %3 = tpu.matmul %1, %2, %cst {dimension_numbers = #tpu.dot_dimension_numbers<[1], [0], [0], [1], [0, 0, 1, 1], [], []>} : vector<8x32xbf16>, vector<32x64xbf16>, vector<8x64xf32> -> vector<8x64xf32>
    %c0_3 = arith.constant 0 : index
    %c0_4 = arith.constant 0 : index
    %4 = vector.load %arg3[%c0_3, %c0_4] : memref<1x64xf32, #tpu.memory_space<vmem>>, vector<1x64xf32>
    %5 = vector.broadcast %4 : vector<1x64xf32> to vector<8x64xf32>
    %6 = arith.addf %3, %5 : vector<8x64xf32>
    %cst_5 = arith.constant 0.000000e+00 : f32
    %7 = vector.broadcast %cst_5 : f32 to vector<8x64xf32>
    %8 = arith.maximumf %6, %7 : vector<8x64xf32>
    %9 = arith.truncf %8 : vector<8x64xf32> to vector<8x64xbf16>
    %c0_6 = arith.constant 0 : index
    %c0_7 = arith.constant 0 : index
    %10 = vector.load %arg4[%c0_6, %c0_7] : memref<64x16xbf16, #tpu.memory_space<vmem>>, vector<64x16xbf16>
    %cst_8 = arith.constant dense<0.000000e+00> : vector<8x16xf32>
    %11 = tpu.matmul %9, %10, %cst_8 {dimension_numbers = #tpu.dot_dimension_numbers<[1], [0], [0], [1], [0, 0, 1, 1], [], []>} : vector<8x64xbf16>, vector<64x16xbf16>, vector<8x16xf32> -> vector<8x16xf32>
    %c0_9 = arith.constant 0 : index
    %c0_10 = arith.constant 0 : index
    %12 = vector.load %arg5[%c0_9, %c0_10] : memref<1x16xf32, #tpu.memory_space<vmem>>, vector<1x16xf32>
    %13 = vector.broadcast %12 : vector<1x16xf32> to vector<8x16xf32>
    %14 = arith.addf %11, %13 : vector<8x16xf32>
    %cst_11 = arith.constant dense<0xFF800000> : vector<8xf32>
    %15 = vector.multi_reduction <maximumf>, %14, %cst_11 [1] : vector<8x16xf32> to vector<8xf32>
    %16 = vector.shape_cast %15 : vector<8xf32> to vector<8x1xf32>
    %17 = vector.broadcast %16 : vector<8x1xf32> to vector<8x16xf32>
    %18 = arith.subf %14, %17 : vector<8x16xf32>
    %19 = math.exp %18 : vector<8x16xf32>
    %cst_12 = arith.constant dense<0.000000e+00> : vector<8xf32>
    %20 = vector.multi_reduction <add>, %19, %cst_12 [1] : vector<8x16xf32> to vector<8xf32>
    %21 = vector.shape_cast %20 : vector<8xf32> to vector<8x1xf32>
    %22 = math.log %21 : vector<8x1xf32>
    %23 = vector.broadcast %16 : vector<8x1xf32> to vector<8x16xf32>
    %24 = arith.subf %14, %23 : vector<8x16xf32>
    %25 = vector.broadcast %22 : vector<8x1xf32> to vector<8x16xf32>
    %26 = arith.subf %24, %25 : vector<8x16xf32>
    %c0_13 = arith.constant 0 : index
    %c0_14 = arith.constant 0 : index
    %27 = vector.load %arg6[%c0_13, %c0_14] : memref<8x16xf32, #tpu.memory_space<vmem>>, vector<8x16xf32>
    tpu.vector_store %arg6[%c0_13, %c0_14], %26 {strides = array<i32>} : memref<8x16xf32, #tpu.memory_space<vmem>>, vector<8x16xf32>,
    return
  }
  func.func @transform_0(%arg0: i32) -> (i32, i32) {
    %c0_i32 = arith.constant 0 : i32
    %c0_i32_0 = arith.constant 0 : i32
    return %arg0, %c0_i32 : i32, i32
  }
  func.func @transform_1(%arg0: i32) -> (i32, i32) {
    %c0_i32 = arith.constant 0 : i32
    %c0_i32_0 = arith.constant 0 : i32
    %c0_i32_1 = arith.constant 0 : i32
    return %c0_i32, %c0_i32_0 : i32, i32
  }
  func.func @transform_2(%arg0: i32) -> (i32, i32) {
    %c0_i32 = arith.constant 0 : i32
    %c0_i32_0 = arith.constant 0 : i32
    %c0_i32_1 = arith.constant 0 : i32
    return %c0_i32, %c0_i32_0 : i32, i32
  }
  func.func @transform_3(%arg0: i32) -> (i32, i32) {
    %c0_i32 = arith.constant 0 : i32
    %c0_i32_0 = arith.constant 0 : i32
    %c0_i32_1 = arith.constant 0 : i32
    return %c0_i32, %c0_i32_0 : i32, i32
  }
  func.func @transform_4(%arg0: i32) -> (i32, i32) {
    %c0_i32 = arith.constant 0 : i32
    %c0_i32_0 = arith.constant 0 : i32
    %c0_i32_1 = arith.constant 0 : i32
    return %c0_i32, %c0_i32_0 : i32, i32
  }
  func.func @transform_5(%arg0: i32) -> (i32, i32) {
    %c0_i32 = arith.constant 0 : i32
    %c0_i32_0 = arith.constant 0 : i32
    return %arg0, %c0_i32 : i32, i32
  }
}

</mosaic_0001>

<llo_original>
// kernel: tpu_custom_call.1
$region0: #{tpu_custom_call.1}
  #allocation0 [shape = 'u32[]', space=smem, size = 0x4, offset = 0x4, fixed_abs, tag = 'smem constant byte address 0x4 - core index']
  #allocation1 [shape = 'u32[144,128]{1,0:T(1,128)}', space=vmem, size = 0x12000, scoped, tag = 'internal scratch']
  %s0 = inlined_call_operand.vmem [shape: f32[8,32], index: 0, kind: input, shape index: {}]
  %s1 = inlined_call_operand.vmem [shape: bf16[32,64], index: 1, kind: input, shape index: {}]
  %s2 = inlined_call_operand.vmem [shape: f32[1,64], index: 2, kind: input, shape index: {}]
  %s3 = inlined_call_operand.vmem [shape: bf16[64,16], index: 3, kind: input, shape index: {}]
  %s4 = inlined_call_operand.vmem [shape: f32[1,16], index: 4, kind: input, shape index: {}]
  %s5 = inlined_call_operand.hbm [shape: f32[8,16], index: 5, kind: output, shape index: {}]
  %s6 = sld [smem:[#allocation0]]
  $region30: #{tpu_custom_call.1} parent=0
    _
  %s8 = ssub.s32 1, %s6
  %s9 = scalar_select 0, %s8, %s6
  $region1: #{tpu_custom_call.1} parent=0
    #allocation2 [shape = 'u8[4096]{0}', space=vmem, size = 0x1000, scoped, tag = 'output window, operand 0, single buffered']
    #allocation3 [shape = 's32[1]{0}', space=sflag, size = 0x4, scoped, tag = 'scoped memory for tpu_custom_call.1']
    %10 = vsyncpa [#allocation3], 0
    // Predicated region
    $region2: #{tpu_custom_call.1} parent=1 // pred_check
      _
    $region3: #{tpu_custom_call.1} parent=1 // pred_check_branch
      %12 = sbr.rel (0) target = $region5
    $region4: #{tpu_custom_call.1} parent=1 // pred_region
      _
    $region5: #{tpu_custom_call.1} parent=1 // pred_fallthru
      _
    // Predicated region
    $region6: #{tpu_custom_call.1} parent=1 // pred_check
      _
    $region7: #{tpu_custom_call.1} parent=1 // pred_check_branch
      %14 = sbr.rel (0) target = $region9
    $region8: #{tpu_custom_call.1} parent=1 // pred_region
      _
    $region9: #{tpu_custom_call.1} parent=1 // pred_fallthru
      _
    // Predicated region
    $region10: #{tpu_custom_call.1} parent=1 // pred_check
      _
    $region11: #{tpu_custom_call.1} parent=1 // pred_check_branch
      %16 = sbr.rel (0) target = $region13
    $region12: #{tpu_custom_call.1} parent=1 // pred_region
      _
    $region13: #{tpu_custom_call.1} parent=1 // pred_fallthru
      _
    // Predicated region
    $region14: #{tpu_custom_call.1} parent=1 // pred_check
      _
    $region15: #{tpu_custom_call.1} parent=1 // pred_check_branch
      %18 = sbr.rel (0) target = $region17
    $region16: #{tpu_custom_call.1} parent=1 // pred_region
      _
    $region17: #{tpu_custom_call.1} parent=1 // pred_fallthru
      _
    // Predicated region
    $region18: #{tpu_custom_call.1} parent=1 // pred_check
      _
    $region19: #{tpu_custom_call.1} parent=1 // pred_check_branch
      %20 = sbr.rel (0) target = $region21
    $region20: #{tpu_custom_call.1} parent=1 // pred_region
      _
    $region21: #{tpu_custom_call.1} parent=1 // pred_fallthru
      _
    %v22 = vld [vmem:[%s0] sm:$0xff]
    %v23 = vpack.c.bf16 %v22, %v22
    %v24 = vld [vmem:[%s1] sm:$0xf]
    %v25 = vld [vmem:[%s1 + $0x4] sm:$0xf]
    %v26 = vld [vmem:[%s1 + $0x8] sm:$0xf]
    %v27 = vld [vmem:[%s1 + $0xc] sm:$0xf]
    %v28 = vld [vmem:[%s2] sm:$0x1]
    %v30 = vlaneseq
    %v31 = vshrl.u32 %v30, 7
    %v32 = vsub.s32 0, %v31
    %v33 = vrot.slane %v28, %v32
    %v39 = vunpack.c.l.b16 %v24
    %v40 = vunpack.c.l.b16 %v25
    %v41 = vunpack.c.l.b16 %v26
    %v42 = vunpack.c.l.b16 %v27
    %v43 = vpack.c.b16 %v40, %v39
    %v44 = vpack.c.b16 %v42, %v41
    %vm47 = vcmask 261120
    %v49 = vsel %vm47, %v23, 0
    %51 = vmatprep.subr.bf16.mxu0 0
    %52 = vmatpush1.bf16.msra.mxu0 %v43
    %53 = vmatprep.subr.bf16.mxu0 0
    %54 = vmatpush1.bf16.msra.mxu0 %v44
    %55 = vmatprep.subr.bf16.mxu0 0
    %56 = vmatpush1.bf16.msra.mxu0 0
    %57 = vmatprep.subr.bf16.mxu0 0
    %58 = vmatpush1.bf16.msra.mxu0 0
    %59 = vmatprep.subr.bf16.mxu0 0
    %60 = vmatpush1.bf16.msra.mxu0 0
    %61 = vmatprep.subr.bf16.mxu0 0
    %62 = vmatpush1.bf16.msra.mxu0 0
    %63 = vmatprep.subr.bf16.mxu0 0
    %64 = vmatpush1.bf16.msra.mxu0 0
    %65 = vmatprep.subr.bf16.mxu0 0
    %66 = vmatpush1.bf16.msra.mxu0 0
    %67 = vmatprep.subr.bf16.mxu0 0
    %68 = vmatpush1.bf16.msra.mxu0 0
    %69 = vmatprep.subr.bf16.mxu0 0
    %70 = vmatpush1.bf16.msra.mxu0 0
    %71 = vmatprep.subr.bf16.mxu0 0
    %72 = vmatpush1.bf16.msra.mxu0 0
    %73 = vmatprep.subr.bf16.mxu0 0
    %74 = vmatpush1.bf16.msra.mxu0 0
    %75 = vmatprep.subr.bf16.mxu0 0
    %76 = vmatpush1.bf16.msra.mxu0 0
    %77 = vmatprep.subr.bf16.mxu0 0
    %78 = vmatpush1.bf16.msra.mxu0 0
    %79 = vmatprep.subr.bf16.mxu0 0
    %80 = vmatpush1.bf16.msra.mxu0 0
    %81 = vmatprep.subr.bf16.mxu0 0
    %82 = vmatpush1.bf16.msra.mxu0 0
    %83 = vmatprep.mubr.bf16.mxu0 0
    %84 = vmatmul.mubr.bf16.gmra.mrb[0].mxu0 %v49
    %v85 = vpop.f32.mrb[0].mxu0
    %v86 = vadd.f32 %v33, %v85
    %v87 = vpop.f32.mrb[0].mxu0
    %v88 = vpop.f32.mrb[0].mxu0
    %v89 = vpop.f32.mrb[0].mxu0
    %90 = vdwg.mxu0
    %v91 = vmax.f32 %v86, 0.0
    %v92 = vpack.c.bf16 %v91, %v91
    %v93 = vld [vmem:[%s3] sm:$0xf]
    %v94 = vld [vmem:[%s3 + $0x4] sm:$0xf]
    %v95 = vld [vmem:[%s3 + $0x8] sm:$0xf]
    %v96 = vld [vmem:[%s3 + $0xc] sm:$0xf]
    %v97 = vld [vmem:[%s3 + $0x10] sm:$0xf]
    %v98 = vld [vmem:[%s3 + $0x14] sm:$0xf]
    %v99 = vld [vmem:[%s3 + $0x18] sm:$0xf]
    %v100 = vld [vmem:[%s3 + $0x1c] sm:$0xf]
    %v101 = vld [vmem:[%s4] sm:$0x1]
    %v103 = vlaneseq
    %v104 = vshrl.u32 %v103, 7
    %v105 = vsub.s32 0, %v104
    %v106 = vrot.slane %v101, %v105
    %v116 = vunpack.c.l.b16 %v93
    %v117 = vunpack.c.l.b16 %v94
    %v118 = vunpack.c.l.b16 %v95
    %v119 = vunpack.c.l.b16 %v96
    %v120 = vunpack.c.l.b16 %v97
    %v121 = vunpack.c.l.b16 %v98
    %v122 = vunpack.c.l.b16 %v99
    %v123 = vunpack.c.l.b16 %v100
    %v124 = vpack.c.b16 %v117, %v116
    %v125 = vpack.c.b16 %v119, %v118
    %v126 = vpack.c.b16 %v121, %v120
    %v127 = vpack.c.b16 %v123, %v122
    %vm132 = vcmask 523264
    %v134 = vsel %vm132, %v92, 0
    %136 = vmatprep.subr.bf16.mxu0 0
    %137 = vmatpush1.bf16.msra.mxu0 %v124
    %138 = vmatprep.subr.bf16.mxu0 0
    %139 = vmatpush1.bf16.msra.mxu0 %v125
    %140 = vmatprep.subr.bf16.mxu0 0
    %141 = vmatpush1.bf16.msra.mxu0 %v126
    %142 = vmatprep.subr.bf16.mxu0 0
    %143 = vmatpush1.bf16.msra.mxu0 %v127
    %144 = vmatprep.subr.bf16.mxu0 0
    %145 = vmatpush1.bf16.msra.mxu0 0
    %146 = vmatprep.subr.bf16.mxu0 0
    %147 = vmatpush1.bf16.msra.mxu0 0
    %148 = vmatprep.subr.bf16.mxu0 0
    %149 = vmatpush1.bf16.msra.mxu0 0
    %150 = vmatprep.subr.bf16.mxu0 0
    %151 = vmatpush1.bf16.msra.mxu0 0
    %152 = vmatprep.subr.bf16.mxu0 0
    %153 = vmatpush1.bf16.msra.mxu0 0
    %154 = vmatprep.subr.bf16.mxu0 0
    %155 = vmatpush1.bf16.msra.mxu0 0
    %156 = vmatprep.subr.bf16.mxu0 0
    %157 = vmatpush1.bf16.msra.mxu0 0
    %158 = vmatprep.subr.bf16.mxu0 0
    %159 = vmatpush1.bf16.msra.mxu0 0
    %160 = vmatprep.subr.bf16.mxu0 0
    %161 = vmatpush1.bf16.msra.mxu0 0
    %162 = vmatprep.subr.bf16.mxu0 0
    %163 = vmatpush1.bf16.msra.mxu0 0
    %164 = vmatprep.subr.bf16.mxu0 0
    %165 = vmatpush1.bf16.msra.mxu0 0
    %166 = vmatprep.subr.bf16.mxu0 0
    %167 = vmatpush1.bf16.msra.mxu0 0
    %168 = vmatprep.mubr.bf16.mxu0 0
    %169 = vmatmul.mubr.bf16.gmra.mrb[0].mxu0 %v134
    %v170 = vpop.f32.mrb[0].mxu0
    %v171 = vadd.f32 %v106, %v170
    %v172 = vpop.f32.mrb[0].mxu0
    %v173 = vpop.f32.mrb[0].mxu0
    %v174 = vpop.f32.mrb[0].mxu0
    %175 = vdwg.mxu0
    %vm176 = vcmask 130048
    %v177 = vsel %vm176, %v171, -inf
    %178 = vmax.xlane.f32.xlu0 %v177
    %v179 = vpop.xlane.xlu0 %178
    %v180 = vsub.f32 %v171, %v179
    %v181 = vmul.f32 %v180, 1.442695
    %v182 = vpow.pop %v181
    %v183 = vsel %vm176, %v182, 0.0
    %184 = vadd.xlane.f32.xlu0 %v183
    %v185 = vpop.xlane.xlu0 %184
    %v186 = vlog2.pop %v185
    %v187 = vmul.f32 %v186, 0.6931472
    %v188 = vsub.f32 %v180, %v187
    %189 = vst.msk [vmem:[#allocation2] sm:$0xff] %vm176, %v188
    // Predicated region
    $region22: #{tpu_custom_call.1} parent=1 // pred_check
      _
    $region23: #{tpu_custom_call.1} parent=1 // pred_check_branch
      %191 = sbr.rel (0) target = $region25
    $region24: #{tpu_custom_call.1} parent=1 // pred_region
      %s193 = ssub.s32 128, 128
      %194 = vsyncadd [#allocation3], %s193
      %s196 = sshll.u32 [#allocation2], 4
      %s197 = int_to_ptr.vmem [resolvable:$true] %s196
      %199 = dma.vmem_to_hbm [thread:$0]  %s197, 128, %s5, [#allocation3]
    $region25: #{tpu_custom_call.1} parent=1 // pred_fallthru
      _
    // Predicated region
    $region26: #{tpu_custom_call.1} parent=1 // pred_check
      _
    $region27: #{tpu_custom_call.1} parent=1 // pred_check_branch
      %201 = sbr.rel (0) target = $region29
    $region28: #{tpu_custom_call.1} parent=1 // pred_region
      %202 = dma.done [#allocation3], 128
    $region29: #{tpu_custom_call.1} parent=1 // pred_fallthru
      _
    %203 = vsyncpa [#allocation3], 1

// kernel: tpu_custom_call.1
$region0: #{tpu_custom_call.1}
  #allocation0 [shape = 'u32[]', space=smem, size = 0x4, offset = 0x4, fixed_abs, tag = 'smem constant byte address 0x4 - core index']
  #allocation1 [shape = 'u32[144,128]{1,0:T(1,128)}', space=vmem, size = 0x12000, scoped, tag = 'internal scratch']
  %s0 = inlined_call_operand.vmem [shape: f32[8,32], index: 0, kind: input, shape index: {}]
  %s1 = inlined_call_operand.vmem [shape: bf16[32,64], index: 1, kind: input, shape index: {}]
  %s2 = inlined_call_operand.vmem [shape: f32[1,64], index: 2, kind: input, shape index: {}]
  %s3 = inlined_call_operand.vmem [shape: bf16[64,16], index: 3, kind: input, shape index: {}]
  %s4 = inlined_call_operand.vmem [shape: f32[1,16], index: 4, kind: input, shape index: {}]
  %s5 = inlined_call_operand.hbm [shape: f32[8,16], index: 5, kind: output, shape index: {}]
  %s6 = sld [smem:[#allocation0]]
  $region30: #{tpu_custom_call.1} parent=0
    _
  %s8 = ssub.s32 1, %s6
  %s9 = scalar_select 0, %s8, %s6
  $region1: #{tpu_custom_call.1} parent=0
    #allocation2 [shape = 'u8[4096]{0}', space=vmem, size = 0x1000, scoped, tag = 'output window, operand 0, single buffered']
    #allocation3 [shape = 's32[1]{0}', space=sflag, size = 0x4, scoped, tag = 'scoped memory for tpu_custom_call.1']
    %10 = vsyncpa [#allocation3], 0
    // Predicated region
    $region2: #{tpu_custom_call.1} parent=1 // pred_check
      _
    $region3: #{tpu_custom_call.1} parent=1 // pred_check_branch
      %12 = sbr.rel (0) target = $region5
    $region4: #{tpu_custom_call.1} parent=1 // pred_region
      _
    $region5: #{tpu_custom_call.1} parent=1 // pred_fallthru
      _
    // Predicated region
    $region6: #{tpu_custom_call.1} parent=1 // pred_check
      _
    $region7: #{tpu_custom_call.1} parent=1 // pred_check_branch
      %14 = sbr.rel (0) target = $region9
    $region8: #{tpu_custom_call.1} parent=1 // pred_region
      _
    $region9: #{tpu_custom_call.1} parent=1 // pred_fallthru
      _
    // Predicated region
    $region10: #{tpu_custom_call.1} parent=1 // pred_check
      _
    $region11: #{tpu_custom_call.1} parent=1 // pred_check_branch
      %16 = sbr.rel (0) target = $region13
    $region12: #{tpu_custom_call.1} parent=1 // pred_region
      _
    $region13: #{tpu_custom_call.1} parent=1 // pred_fallthru
      _
    // Predicated region
    $region14: #{tpu_custom_call.1} parent=1 // pred_check
      _
    $region15: #{tpu_custom_call.1} parent=1 // pred_check_branch
      %18 = sbr.rel (0) target = $region17
    $region16: #{tpu_custom_call.1} parent=1 // pred_region
      _
    $region17: #{tpu_custom_call.1} parent=1 // pred_fallthru
      _
    // Predicated region
    $region18: #{tpu_custom_call.1} parent=1 // pred_check
      _
    $region19: #{tpu_custom_call.1} parent=1 // pred_check_branch
      %20 = sbr.rel (0) target = $region21
    $region20: #{tpu_custom_call.1} parent=1 // pred_region
      _
    $region21: #{tpu_custom_call.1} parent=1 // pred_fallthru
      _
    %v22 = vld [vmem:[%s0] sm:$0xff]
    %v23 = vpack.c.bf16 %v22, %v22
    %v24 = vld [vmem:[%s1] sm:$0xf]
    %v25 = vld [vmem:[%s1 + $0x4] sm:$0xf]
    %v26 = vld [vmem:[%s1 + $0x8] sm:$0xf]
    %v27 = vld [vmem:[%s1 + $0xc] sm:$0xf]
    %v28 = vld [vmem:[%s2] sm:$0x1]
    %v30 = vlaneseq
    %v31 = vshrl.u32 %v30, 7
    %v32 = vsub.s32 0, %v31
    %v33 = vrot.slane %v28, %v32
    %v39 = vunpack.c.l.b16 %v24
    %v40 = vunpack.c.l.b16 %v25
    %v41 = vunpack.c.l.b16 %v26
    %v42 = vunpack.c.l.b16 %v27
    %v43 = vpack.c.b16 %v40, %v39
    %v44 = vpack.c.b16 %v42, %v41
    %vm47 = vcmask 261120
    %v49 = vsel %vm47, %v23, 0
    %51 = vmatprep.subr.bf16.mxu0 0
    %52 = vmatpush1.bf16.msra.mxu0 %v43
    %53 = vmatprep.subr.bf16.mxu0 0
    %54 = vmatpush1.bf16.msra.mxu0 %v44
    %55 = vmatprep.subr.bf16.mxu0 0
    %56 = vmatpush1.bf16.msra.mxu0 0
    %57 = vmatprep.subr.bf16.mxu0 0
    %58 = vmatpush1.bf16.msra.mxu0 0
    %59 = vmatprep.subr.bf16.mxu0 0
    %60 = vmatpush1.bf16.msra.mxu0 0
    %61 = vmatprep.subr.bf16.mxu0 0
    %62 = vmatpush1.bf16.msra.mxu0 0
    %63 = vmatprep.subr.bf16.mxu0 0
    %64 = vmatpush1.bf16.msra.mxu0 0
    %65 = vmatprep.subr.bf16.mxu0 0
    %66 = vmatpush1.bf16.msra.mxu0 0
    %67 = vmatprep.subr.bf16.mxu0 0
    %68 = vmatpush1.bf16.msra.mxu0 0
    %69 = vmatprep.subr.bf16.mxu0 0
    %70 = vmatpush1.bf16.msra.mxu0 0
    %71 = vmatprep.subr.bf16.mxu0 0
    %72 = vmatpush1.bf16.msra.mxu0 0
    %73 = vmatprep.subr.bf16.mxu0 0
    %74 = vmatpush1.bf16.msra.mxu0 0
    %75 = vmatprep.subr.bf16.mxu0 0
    %76 = vmatpush1.bf16.msra.mxu0 0
    %77 = vmatprep.subr.bf16.mxu0 0
    %78 = vmatpush1.bf16.msra.mxu0 0
    %79 = vmatprep.subr.bf16.mxu0 0
    %80 = vmatpush1.bf16.msra.mxu0 0
    %81 = vmatprep.subr.bf16.mxu0 0
    %82 = vmatpush1.bf16.msra.mxu0 0
    %83 = vmatprep.mubr.bf16.mxu0 0
    %84 = vmatmul.mubr.bf16.gmra.mrb[0].mxu0 %v49
    %v85 = vpop.f32.mrb[0].mxu0
    %v86 = vadd.f32 %v33, %v85
    %v87 = vpop.f32.mrb[0].mxu0
    %v88 = vpop.f32.mrb[0].mxu0
    %v89 = vpop.f32.mrb[0].mxu0
    %90 = vdwg.mxu0
    %v91 = vmax.f32 %v86, 0.0
    %v92 = vpack.c.bf16 %v91, %v91
    %v93 = vld [vmem:[%s3] sm:$0xf]
    %v94 = vld [vmem:[%s3 + $0x4] sm:$0xf]
    %v95 = vld [vmem:[%s3 + $0x8] sm:$0xf]
    %v96 = vld [vmem:[%s3 + $0xc] sm:$0xf]
    %v97 = vld [vmem:[%s3 + $0x10] sm:$0xf]
    %v98 = vld [vmem:[%s3 + $0x14] sm:$0xf]
    %v99 = vld [vmem:[%s3 + $0x18] sm:$0xf]
    %v100 = vld [vmem:[%s3 + $0x1c] sm:$0xf]
    %v101 = vld [vmem:[%s4] sm:$0x1]
    %v103 = vlaneseq
    %v104 = vshrl.u32 %v103, 7
    %v105 = vsub.s32 0, %v104
    %v106 = vrot.slane %v101, %v105
    %v116 = vunpack.c.l.b16 %v93
    %v117 = vunpack.c.l.b16 %v94
    %v118 = vunpack.c.l.b16 %v95
    %v119 = vunpack.c.l.b16 %v96
    %v120 = vunpack.c.l.b16 %v97
    %v121 = vunpack.c.l.b16 %v98
    %v122 = vunpack.c.l.b16 %v99
    %v123 = vunpack.c.l.b16 %v100
    %v124 = vpack.c.b16 %v117, %v116
    %v125 = vpack.c.b16 %v119, %v118
    %v126 = vpack.c.b16 %v121, %v120
    %v127 = vpack.c.b16 %v123, %v122
    %vm132 = vcmask 523264
    %v134 = vsel %vm132, %v92, 0
    %136 = vmatprep.subr.bf16.mxu0 0
    %137 = vmatpush1.bf16.msra.mxu0 %v124
    %138 = vmatprep.subr.bf16.mxu0 0
    %139 = vmatpush1.bf16.msra.mxu0 %v125
    %140 = vmatprep.subr.bf16.mxu0 0
    %141 = vmatpush1.bf16.msra.mxu0 %v126
    %142 = vmatprep.subr.bf16.mxu0 0
    %143 = vmatpush1.bf16.msra.mxu0 %v127
    %144 = vmatprep.subr.bf16.mxu0 0
    %145 = vmatpush1.bf16.msra.mxu0 0
    %146 = vmatprep.subr.bf16.mxu0 0
    %147 = vmatpush1.bf16.msra.mxu0 0
    %148 = vmatprep.subr.bf16.mxu0 0
    %149 = vmatpush1.bf16.msra.mxu0 0
    %150 = vmatprep.subr.bf16.mxu0 0
    %151 = vmatpush1.bf16.msra.mxu0 0
    %152 = vmatprep.subr.bf16.mxu0 0
    %153 = vmatpush1.bf16.msra.mxu0 0
    %154 = vmatprep.subr.bf16.mxu0 0
    %155 = vmatpush1.bf16.msra.mxu0 0
    %156 = vmatprep.subr.bf16.mxu0 0
    %157 = vmatpush1.bf16.msra.mxu0 0
    %158 = vmatprep.subr.bf16.mxu0 0
    %159 = vmatpush1.bf16.msra.mxu0 0
    %160 = vmatprep.subr.bf16.mxu0 0
    %161 = vmatpush1.bf16.msra.mxu0 0
    %162 = vmatprep.subr.bf16.mxu0 0
    %163 = vmatpush1.bf16.msra.mxu0 0
    %164 = vmatprep.subr.bf16.mxu0 0
    %165 = vmatpush1.bf16.msra.mxu0 0
    %166 = vmatprep.subr.bf16.mxu0 0
    %167 = vmatpush1.bf16.msra.mxu0 0
    %168 = vmatprep.mubr.bf16.mxu0 0
    %169 = vmatmul.mubr.bf16.gmra.mrb[0].mxu0 %v134
    %v170 = vpop.f32.mrb[0].mxu0
    %v171 = vadd.f32 %v106, %v170
    %v172 = vpop.f32.mrb[0].mxu0
    %v173 = vpop.f32.mrb[0].mxu0
    %v174 = vpop.f32.mrb[0].mxu0
    %175 = vdwg.mxu0
    %vm176 = vcmask 130048
    %v177 = vsel %vm176, %v171, -inf
    %178 = vmax.xlane.f32.xlu0 %v177
    %v179 = vpop.xlane.xlu0 %178
    %v180 = vsub.f32 %v171, %v179
    %v181 = vmul.f32 %v180, 1.442695
    %v182 = vpow.pop %v181
    %v183 = vsel %vm176, %v182, 0.0
    %184 = vadd.xlane.f32.xlu0 %v183
    %v185 = vpop.xlane.xlu0 %184
    %v186 = vlog2.pop %v185
    %v187 = vmul.f32 %v186, 0.6931472
    %v188 = vsub.f32 %v180, %v187
    %189 = vst.msk [vmem:[#allocation2] sm:$0xff] %vm176, %v188
    // Predicated region
    $region22: #{tpu_custom_call.1} parent=1 // pred_check
      _
    $region23: #{tpu_custom_call.1} parent=1 // pred_check_branch
      %191 = sbr.rel (0) target = $region25
    $region24: #{tpu_custom_call.1} parent=1 // pred_region
      %s193 = ssub.s32 128, 128
      %194 = vsyncadd [#allocation3], %s193
      %s196 = sshll.u32 [#allocation2], 4
      %s197 = int_to_ptr.vmem [resolvable:$true] %s196
      %199 = dma.vmem_to_hbm [thread:$0]  %s197, 128, %s5, [#allocation3]
    $region25: #{tpu_custom_call.1} parent=1 // pred_fallthru
      _
    // Predicated region
    $region26: #{tpu_custom_call.1} parent=1 // pred_check
      _
    $region27: #{tpu_custom_call.1} parent=1 // pred_check_branch
      %201 = sbr.rel (0) target = $region29
    $region28: #{tpu_custom_call.1} parent=1 // pred_region
      %202 = dma.done [#allocation3], 128
    $region29: #{tpu_custom_call.1} parent=1 // pred_fallthru
      _
    %203 = vsyncpa [#allocation3], 1

</llo_original>
